<compile_context>
chip_gen: v6e
topology: v6e:2x2x1
jax: 0.10.0
libtpu: 0.0.40
codegen_flags: <defaults>
</compile_context>

<pallas_src>
import functools

import jax
import jax.numpy as jnp
import numpy as np
from jax.experimental import pallas as pl
from jax.experimental.pallas import tpu as pltpu

NUM_NEURONS = 128


def qnet_kernel(s_ref, a_ref, w1s_ref, w1a_ref, b1_ref, w2_ref, b2_ref,
                w3_ref, b3_ref, o_ref, *, compute_dtype):
    # Layer 1 (fused concat):  cat([s, a]) @ W1 == s @ W1[:S] + a @ W1[S:]
    s = s_ref[...].astype(compute_dtype)
    a = a_ref[...].astype(compute_dtype)
    h1 = (jnp.dot(s, w1s_ref[...], preferred_element_type=jnp.float32)
          + jnp.dot(a, w1a_ref[...], preferred_element_type=jnp.float32)
          + b1_ref[...])
    h1 = jnp.maximum(h1, 0.0)              # bias + ReLU on the f32 accumulator (VPU)

    # Layer 2: (tb, 128) @ (128, 128) on the MXU, f32 accumulation.
    h2 = jnp.dot(h1.astype(compute_dtype), w2_ref[...],
                 preferred_element_type=jnp.float32) + b2_ref[...]
    h2 = jnp.maximum(h2, 0.0)

    # Layer 3 (128 -> 1), emitted LANE-DENSE as a (1, tb) row:
    #   q_row = W3_row (1,128) contracted with h2 (tb,128) over the 128 axis
    # (same transposed-RHS contraction pattern as q @ k.T in attention kernels).
    q_row = jax.lax.dot_general(
        w3_ref[...], h2.astype(compute_dtype),
        (((1,), (1,)), ((), ())), preferred_element_type=jnp.float32)
    o_ref[...] = q_row + b3_ref[0]         # b3 is a scalar read from SMEM


def qnet_forward(state, action, params, *, block_b=2048,
                 compute_dtype=jnp.bfloat16):
    """QNet forward.  Wrap in jax.jit so the weight slicing/casts below fold away."""
    w1, b1, w2, b2, w3, b3 = params
    B, state_dim = state.shape
    action_dim = action.shape[1]

    # Static weight prep (sliced / cast once under jit; no runtime concat).
    w1_s = w1[:state_dim].astype(compute_dtype)
    w1_a = w1[state_dim:].astype(compute_dtype)
    w2_c = w2.astype(compute_dtype)
    w3_row = w3.reshape(1, NUM_NEURONS).astype(compute_dtype)
    b1_r = b1.reshape(1, NUM_NEURONS)                 # biases stay f32 (f32 accumulators)
    b2_r = b2.reshape(1, NUM_NEURONS)
    b3_s = b3.reshape(1).astype(jnp.float32)          # scalar -> SMEM

    # Batch tile: whole batch in one step when it fits (biggest tile == least per-step
    # overhead); otherwise a multiple-of-8 tile.
    if B <= block_b:
        tb = B
    else:
        tb = max(8, (block_b // 8) * 8)
    num_blocks = pl.cdiv(B, tb)
    grid = (num_blocks,)

    act_spec = lambda d: pl.BlockSpec((tb, d), lambda i: (i, 0))

    def resident(arr):                                # full-array block, index never
        nd = arr.ndim                                 # changes -> stays in VMEM, no re-DMA
        return pl.BlockSpec(arr.shape, lambda i, nd=nd: (0,) * nd)

    d_in = state_dim + action_dim
    w_elems = d_in * NUM_NEURONS + NUM_NEURONS * NUM_NEURONS + NUM_NEURONS
    w_bytes = w_elems * np.dtype(compute_dtype).itemsize + 4 * (2 * NUM_NEURONS + 1)
    flops = 2 * B * w_elems
    bytes_accessed = int(4 * B * d_in + 4 * num_blocks * tb + w_bytes)
    cost = pl.CostEstimate(flops=flops, transcendentals=0,
                           bytes_accessed=bytes_accessed)

    kernel = functools.partial(qnet_kernel, compute_dtype=compute_dtype)

    out = pl.pallas_call(
        kernel,
        out_shape=jax.ShapeDtypeStruct((num_blocks, 1, tb), jnp.float32),
        grid=grid,
        in_specs=[
            act_spec(state_dim), act_spec(action_dim),
            resident(w1_s), resident(w1_a), resident(b1_r),
            resident(w2_c), resident(b2_r),
            resident(w3_row),
            pl.BlockSpec(memory_space=pltpu.MemorySpace.SMEM),     # b3 scalar
        ],
        # Lane-dense output row per grid step; (None, 1, tb) squeezes the block dim.
        out_specs=pl.BlockSpec((None, 1, tb), lambda i: (i, 0, 0)),
        compiler_params=pltpu.CompilerParams(
            dimension_semantics=("parallel",),        # v7x: shard batch grid over 2 TCs
            vmem_limit_bytes=32 * 1024 * 1024),
        cost_estimate=cost,
    )(state, action, w1_s, w1_a, b1_r, w2_c, b2_r, w3_row, b3_s)

    # (num_blocks, 1, tb) -> (B, 1); garbage rows of a partial trailing block are
    # written to the in-bounds padded tail and sliced off here.
    return out.reshape(num_blocks * tb)[:B].reshape(B, 1)


def init_qnet_params(key, state_dim, action_dim):
    """PyTorch-default-style init: U(-1/sqrt(fan_in), +1/sqrt(fan_in))."""
    dims = [(state_dim + action_dim, NUM_NEURONS),
            (NUM_NEURONS, NUM_NEURONS),
            (NUM_NEURONS, 1)]
    params = []
    keys = jax.random.split(key, 2 * len(dims))
    for i, (fan_in, fan_out) in enumerate(dims):
        bound = 1.0 / np.sqrt(fan_in)
        w = jax.random.uniform(keys[2 * i], (fan_in, fan_out),
                               minval=-bound, maxval=bound, dtype=jnp.float32)
        b = jax.random.uniform(keys[2 * i + 1], (1, fan_out),
                               minval=-bound, maxval=bound, dtype=jnp.float32)
        params += [w, b]
    return tuple(params)


def qnet_reference(state, action, params):
    w1, b1, w2, b2, w3, b3 = params
    x = jnp.concatenate([state, action], axis=1)
    h1 = jnp.maximum(x @ w1 + b1, 0.0)
    h2 = jnp.maximum(h1 @ w2 + b2, 0.0)
    return h2 @ w3 + b3


if __name__ == "__main__":
    key = jax.random.PRNGKey(0)
    k_param, k_data = jax.random.split(key, 2)

    state_dim, action_dim = 16, 4
    params = init_qnet_params(k_param, state_dim, action_dim)

    # f32 path (strict check): single block, exact multi-block grid, and a partial
    # trailing block.
    for batch, block_b in [(8, 2048), (64, 16), (20, 16)]:
        ks, ka = jax.random.split(jax.random.fold_in(k_data, batch), 2)
        state = jax.random.normal(ks, (batch, state_dim), dtype=jnp.float32)
        action = jax.random.normal(ka, (batch, action_dim), dtype=jnp.float32)

        fwd = jax.jit(functools.partial(qnet_forward, block_b=block_b,
                                        compute_dtype=jnp.float32))
        out = jax.block_until_ready(fwd(state, action, params))
        ref = qnet_reference(state, action, params)
        np.testing.assert_allclose(np.asarray(out), np.asarray(ref),
                                   rtol=1e-5, atol=1e-5)
        assert out.shape == (batch, 1)

    # bf16 MXU-operand path (default; f32 accumulation in-kernel): looser tolerance.
    ks, ka = jax.random.split(jax.random.fold_in(k_data, 123), 2)
    state = jax.random.normal(ks, (256, state_dim), dtype=jnp.float32)
    action = jax.random.normal(ka, (256, action_dim), dtype=jnp.float32)
    fwd_bf16 = jax.jit(functools.partial(qnet_forward, compute_dtype=jnp.bfloat16))
    out = jax.block_until_ready(fwd_bf16(state, action, params))
    ref = qnet_reference(state, action, params)
    np.testing.assert_allclose(np.asarray(out), np.asarray(ref),
                               rtol=5e-2, atol=5e-2)

    print("KERNEL_OK")
</pallas_src>

<mosaic_0001>
module attributes {stable_mosaic.version = 11 : i64} {
  func.func @qnet_kernel(%arg0: i32, %arg1: memref<8x16xf32, #tpu.memory_space<vmem>>, %arg2: memref<8x4xf32, #tpu.memory_space<vmem>>, %arg3: memref<16x128xf32, #tpu.memory_space<vmem>>, %arg4: memref<4x128xf32, #tpu.memory_space<vmem>>, %arg5: memref<1x128xf32, #tpu.memory_space<vmem>>, %arg6: memref<128x128xf32, #tpu.memory_space<vmem>>, %arg7: memref<1x128xf32, #tpu.memory_space<vmem>>, %arg8: memref<1x128xf32, #tpu.memory_space<vmem>>, %arg9: memref<1xf32, #tpu.memory_space<smem>>, %arg10: memref<1x1x8xf32, #tpu.memory_space<vmem>>) attributes {dimension_semantics = [#tpu.dimension_semantics<parallel>], iteration_bounds = array<i64: 1>, scalar_prefetch = 0 : i64, scratch_operands = 0 : i64, tpu.core_type = #tpu.core_type<tc>, window_params = [{transform_indices = @transform_0, window_bounds = array<i64: 8, 16>}, {transform_indices = @transform_1, window_bounds = array<i64: 8, 4>}, {pipeline_mode = #tpu.pipeline_mode<synchronous>, transform_indices = @transform_2, window_bounds = array<i64: 16, 128>}, {pipeline_mode = #tpu.pipeline_mode<synchronous>, transform_indices = @transform_3, window_bounds = array<i64: 4, 128>}, {pipeline_mode = #tpu.pipeline_mode<synchronous>, transform_indices = @transform_4, window_bounds = array<i64: 1, 128>}, {pipeline_mode = #tpu.pipeline_mode<synchronous>, transform_indices = @transform_5, window_bounds = array<i64: 128, 128>}, {pipeline_mode = #tpu.pipeline_mode<synchronous>, transform_indices = @transform_6, window_bounds = array<i64: 1, 128>}, {pipeline_mode = #tpu.pipeline_mode<synchronous>, transform_indices = @transform_7, window_bounds = array<i64: 1, 128>}, {transform_indices = @transform_8, window_bounds = array<i64: 1>}, {transform_indices = @transform_9, window_bounds = array<i64: 1, 1, 8>}]} {
    %c0 = arith.constant 0 : index
    %c0_0 = arith.constant 0 : index
    %0 = vector.load %arg1[%c0, %c0_0] : memref<8x16xf32, #tpu.memory_space<vmem>>, vector<8x16xf32>
    %c0_1 = arith.constant 0 : index
    %c0_2 = arith.constant 0 : index
    %1 = vector.load %arg2[%c0_1, %c0_2] : memref<8x4xf32, #tpu.memory_space<vmem>>, vector<8x4xf32>
    %c0_3 = arith.constant 0 : index
    %c0_4 = arith.constant 0 : index
    %2 = vector.load %arg3[%c0_3, %c0_4] : memref<16x128xf32, #tpu.memory_space<vmem>>, vector<16x128xf32>
    %cst = arith.constant dense<0.000000e+00> : vector<8x128xf32>
    %3 = tpu.matmul %0, %2, %cst {dimension_numbers = #tpu.dot_dimension_numbers<[1], [0], [0], [1], [0, 0, 1, 1], [], []>} : vector<8x16xf32>, vector<16x128xf32>, vector<8x128xf32> -> vector<8x128xf32>
    %c0_5 = arith.constant 0 : index
    %c0_6 = arith.constant 0 : index
    %4 = vector.load %arg4[%c0_5, %c0_6] : memref<4x128xf32, #tpu.memory_space<vmem>>, vector<4x128xf32>
    %cst_7 = arith.constant dense<0.000000e+00> : vector<8x128xf32>
    %5 = tpu.matmul %1, %4, %cst_7 {dimension_numbers = #tpu.dot_dimension_numbers<[1], [0], [0], [1], [0, 0, 1, 1], [], []>} : vector<8x4xf32>, vector<4x128xf32>, vector<8x128xf32> -> vector<8x128xf32>
    %6 = arith.addf %3, %5 : vector<8x128xf32>
    %c0_8 = arith.constant 0 : index
    %c0_9 = arith.constant 0 : index
    %7 = vector.load %arg5[%c0_8, %c0_9] : memref<1x128xf32, #tpu.memory_space<vmem>>, vector<1x128xf32>
    %8 = vector.broadcast %7 : vector<1x128xf32> to vector<8x128xf32>
    %9 = arith.addf %6, %8 : vector<8x128xf32>
    %cst_10 = arith.constant 0.000000e+00 : f32
    %10 = vector.broadcast %cst_10 : f32 to vector<8x128xf32>
    %11 = arith.maximumf %9, %10 : vector<8x128xf32>
    %c0_11 = arith.constant 0 : index
    %c0_12 = arith.constant 0 : index
    %12 = vector.load %arg6[%c0_11, %c0_12] : memref<128x128xf32, #tpu.memory_space<vmem>>, vector<128x128xf32>
    %cst_13 = arith.constant dense<0.000000e+00> : vector<8x128xf32>
    %13 = tpu.matmul %11, %12, %cst_13 {dimension_numbers = #tpu.dot_dimension_numbers<[1], [0], [0], [1], [0, 0, 1, 1], [], []>} : vector<8x128xf32>, vector<128x128xf32>, vector<8x128xf32> -> vector<8x128xf32>
    %c0_14 = arith.constant 0 : index
    %c0_15 = arith.constant 0 : index
    %14 = vector.load %arg7[%c0_14, %c0_15] : memref<1x128xf32, #tpu.memory_space<vmem>>, vector<1x128xf32>
    %15 = vector.broadcast %14 : vector<1x128xf32> to vector<8x128xf32>
    %16 = arith.addf %13, %15 : vector<8x128xf32>
    %cst_16 = arith.constant 0.000000e+00 : f32
    %17 = vector.broadcast %cst_16 : f32 to vector<8x128xf32>
    %18 = arith.maximumf %16, %17 : vector<8x128xf32>
    %c0_17 = arith.constant 0 : index
    %c0_18 = arith.constant 0 : index
    %19 = vector.load %arg8[%c0_17, %c0_18] : memref<1x128xf32, #tpu.memory_space<vmem>>, vector<1x128xf32>
    %cst_19 = arith.constant dense<0.000000e+00> : vector<1x8xf32>
    %20 = tpu.matmul %19, %18, %cst_19 {dimension_numbers = #tpu.dot_dimension_numbers<[1], [1], [0], [0], [0, 0, 1, 0], [], []>} : vector<1x128xf32>, vector<8x128xf32>, vector<1x8xf32> -> vector<1x8xf32>
    %c0_20 = arith.constant 0 : index
    %21 = memref.load %arg9[%c0_20] : memref<1xf32, #tpu.memory_space<smem>>
    %22 = vector.broadcast %21 : f32 to vector<1x8xf32>
    %23 = arith.addf %20, %22 : vector<1x8xf32>
    %c0_21 = arith.constant 0 : index
    %c0_22 = arith.constant 0 : index
    %c0_23 = arith.constant 0 : index
    %24 = vector.load %arg10[%c0_21, %c0_22, %c0_23] : memref<1x1x8xf32, #tpu.memory_space<vmem>>, vector<1x1x8xf32>
    %25 = vector.shape_cast %24 : vector<1x1x8xf32> to vector<1x8xf32>
    %26 = vector.shape_cast %23 : vector<1x8xf32> to vector<1x1x8xf32>
    tpu.vector_store %arg10[%c0_21, %c0_22, %c0_23], %26 {strides = array<i32>} : memref<1x1x8xf32, #tpu.memory_space<vmem>>, vector<1x1x8xf32>,
    return
  }
  func.func @transform_0(%arg0: i32) -> (i32, i32) {
    %c0_i32 = arith.constant 0 : i32
    %c0_i32_0 = arith.constant 0 : i32
    return %arg0, %c0_i32 : i32, i32
  }
  func.func @transform_1(%arg0: i32) -> (i32, i32) {
    %c0_i32 = arith.constant 0 : i32
    %c0_i32_0 = arith.constant 0 : i32
    return %arg0, %c0_i32 : i32, i32
  }
  func.func @transform_2(%arg0: i32) -> (i32, i32) {
    %c0_i32 = arith.constant 0 : i32
    %c0_i32_0 = arith.constant 0 : i32
    %c0_i32_1 = arith.constant 0 : i32
    return %c0_i32, %c0_i32_0 : i32, i32
  }
  func.func @transform_3(%arg0: i32) -> (i32, i32) {
    %c0_i32 = arith.constant 0 : i32
    %c0_i32_0 = arith.constant 0 : i32
    %c0_i32_1 = arith.constant 0 : i32
    return %c0_i32, %c0_i32_0 : i32, i32
  }
  func.func @transform_4(%arg0: i32) -> (i32, i32) {
    %c0_i32 = arith.constant 0 : i32
    %c0_i32_0 = arith.constant 0 : i32
    %c0_i32_1 = arith.constant 0 : i32
    return %c0_i32, %c0_i32_0 : i32, i32
  }
  func.func @transform_5(%arg0: i32) -> (i32, i32) {
    %c0_i32 = arith.constant 0 : i32
    %c0_i32_0 = arith.constant 0 : i32
    %c0_i32_1 = arith.constant 0 : i32
    return %c0_i32, %c0_i32_0 : i32, i32
  }
  func.func @transform_6(%arg0: i32) -> (i32, i32) {
    %c0_i32 = arith.constant 0 : i32
    %c0_i32_0 = arith.constant 0 : i32
    %c0_i32_1 = arith.constant 0 : i32
    return %c0_i32, %c0_i32_0 : i32, i32
  }
  func.func @transform_7(%arg0: i32) -> (i32, i32) {
    %c0_i32 = arith.constant 0 : i32
    %c0_i32_0 = arith.constant 0 : i32
    %c0_i32_1 = arith.constant 0 : i32
    return %c0_i32, %c0_i32_0 : i32, i32
  }
  func.func @transform_8(%arg0: i32) -> i32 {
    %c0_i32 = arith.constant 0 : i32
    %c0_i32_0 = arith.constant 0 : i32
    return %c0_i32 : i32
  }
  func.func @transform_9(%arg0: i32) -> (i32, i32, i32) {
    %c0_i32 = arith.constant 0 : i32
    %c0_i32_0 = arith.constant 0 : i32
    %c0_i32_1 = arith.constant 0 : i32
    return %arg0, %c0_i32, %c0_i32_0 : i32, i32, i32
  }
}

</mosaic_0001>

<llo_original>
// kernel: qnet_forward.1
$region0: #{qnet_forward.1}
  #allocation0 [shape = 'u32[]', space=smem, size = 0x4, offset = 0x4, fixed_abs, tag = 'smem constant byte address 0x4 - core index']
  #allocation1 [shape = 'u32[144,128]{1,0:T(1,128)}', space=vmem, size = 0x12000, scoped, tag = 'internal scratch']
  #allocation2 [shape = 'f32[1]{0:T(128)S(6)}', space=smem, size = 0x200, scoped, tag = 'scoped memory for qnet_forward.1']
  %s0 = inlined_call_operand.vmem [shape: f32[8,16], index: 0, kind: input, shape index: {}]
  %s1 = inlined_call_operand.vmem [shape: f32[8,4], index: 1, kind: input, shape index: {}]
  %s2 = inlined_call_operand.vmem [shape: f32[16,128], index: 2, kind: input, shape index: {}]
  %s3 = inlined_call_operand.vmem [shape: f32[4,128], index: 3, kind: input, shape index: {}]
  %s4 = inlined_call_operand.vmem [shape: f32[1,128], index: 4, kind: input, shape index: {}]
  %s5 = inlined_call_operand.hbm [shape: f32[128,128], index: 5, kind: input, shape index: {}]
  %s6 = inlined_call_operand.vmem [shape: f32[1,128], index: 6, kind: input, shape index: {}]
  %s7 = inlined_call_operand.vmem [shape: f32[1,128], index: 7, kind: input, shape index: {}]
  %s8 = inlined_call_operand.<no memory space> [shape: f32[1], index: 8, kind: input, shape index: {}]
  %s9 = inlined_call_operand.hbm [shape: f32[1,1,8], index: 9, kind: output, shape index: {}]
  %s10 = sld [smem:[#allocation0]]
  $region50: #{qnet_forward.1} parent=0
    _
  %s12 = ssub.s32 1, %s10
  %s13 = scalar_select 0, %s12, %s10
  %14 = sst [smem:[#allocation2]] %s8
  $region1: #{qnet_forward.1} parent=0
    #allocation3 [shape = 'u8[65536]{0}', space=vmem, size = 0x10000, scoped, tag = 'input window, operand 5, single buffered']
    #allocation4 [shape = 's32[1]{0}', space=sflag, size = 0x4, scoped, tag = 'scoped memory for qnet_forward.1']
    #allocation5 [shape = 's32[1]{0}', space=sflag, size = 0x4, scoped, tag = 'scoped memory for qnet_forward.1']
    #allocation6 [shape = 'u8[512]{0}', space=vmem, size = 0x400, scoped, tag = 'output window, operand 0, single buffered']
    %15 = vsyncpa [#allocation4], 0
    %16 = vsyncpa [#allocation5], 0
    // Predicated region
    $region2: #{qnet_forward.1} parent=1 // pred_check
      _
    $region3: #{qnet_forward.1} parent=1 // pred_check_branch
      %18 = sbr.rel (0) target = $region5
    $region4: #{qnet_forward.1} parent=1 // pred_region
      _
    $region5: #{qnet_forward.1} parent=1 // pred_fallthru
      _
    // Predicated region
    $region6: #{qnet_forward.1} parent=1 // pred_check
      _
    $region7: #{qnet_forward.1} parent=1 // pred_check_branch
      %20 = sbr.rel (0) target = $region9
    $region8: #{qnet_forward.1} parent=1 // pred_region
      _
    $region9: #{qnet_forward.1} parent=1 // pred_fallthru
      _
    // Predicated region
    $region10: #{qnet_forward.1} parent=1 // pred_check
      _
    $region11: #{qnet_forward.1} parent=1 // pred_check_branch
      %22 = sbr.rel (0) target = $region13
    $region12: #{qnet_forward.1} parent=1 // pred_region
      _
    $region13: #{qnet_forward.1} parent=1 // pred_fallthru
      _
    // Predicated region
    $region14: #{qnet_forward.1} parent=1 // pred_check
      _
    $region15: #{qnet_forward.1} parent=1 // pred_check_branch
      %24 = sbr.rel (0) target = $region17
    $region16: #{qnet_forward.1} parent=1 // pred_region
      _
    $region17: #{qnet_forward.1} parent=1 // pred_fallthru
      _
    // Predicated region
    $region18: #{qnet_forward.1} parent=1 // pred_check
      _
    $region19: #{qnet_forward.1} parent=1 // pred_check_branch
      %26 = sbr.rel (0) target = $region21
    $region20: #{qnet_forward.1} parent=1 // pred_region
      _
    $region21: #{qnet_forward.1} parent=1 // pred_fallthru
      _
    // Predicated region
    $region22: #{qnet_forward.1} parent=1 // pred_check
      _
    $region23: #{qnet_forward.1} parent=1 // pred_check_branch
      %28 = sbr.rel (0) target = $region25
    $region24: #{qnet_forward.1} parent=1 // pred_region
      %s30 = ssub.s32 2048, 2048
      %31 = vsyncadd [#allocation4], %s30
      %s32 = sshll.u32 [#allocation3], 4
      %s33 = int_to_ptr.vmem [resolvable:$true] %s32
      %38 = dma.hbm_to_vmem [thread:$0]  %s5, 2048, %s33, [#allocation4], 128, 128, 8
    $region25: #{qnet_forward.1} parent=1 // pred_fallthru
      _
    // Predicated region
    $region26: #{qnet_forward.1} parent=1 // pred_check
      _
    $region27: #{qnet_forward.1} parent=1 // pred_check_branch
      %40 = sbr.rel (0) target = $region29
    $region28: #{qnet_forward.1} parent=1 // pred_region
      _
    $region29: #{qnet_forward.1} parent=1 // pred_fallthru
      _
    // Predicated region
    $region30: #{qnet_forward.1} parent=1 // pred_check
      _
    $region31: #{qnet_forward.1} parent=1 // pred_check_branch
      %42 = sbr.rel (0) target = $region33
    $region32: #{qnet_forward.1} parent=1 // pred_region
      _
    $region33: #{qnet_forward.1} parent=1 // pred_fallthru
      _
    // Predicated region
    $region34: #{qnet_forward.1} parent=1 // pred_check
      _
    $region35: #{qnet_forward.1} parent=1 // pred_check_branch
      %44 = sbr.rel (0) target = $region37
    $region36: #{qnet_forward.1} parent=1 // pred_region
      _
    $region37: #{qnet_forward.1} parent=1 // pred_fallthru
      _
    // Predicated region
    $region38: #{qnet_forward.1} parent=1 // pred_check
      _
    $region39: #{qnet_forward.1} parent=1 // pred_check_branch
      %46 = sbr.rel (0) target = $region41
    $region40: #{qnet_forward.1} parent=1 // pred_region
      %47 = dma.done [#allocation4], 2048
    $region41: #{qnet_forward.1} parent=1 // pred_fallthru
      _
    %v48 = vld [vmem:[%s0] sm:$0xff]
    %v49 = vld [vmem:[%s1] sm:$0xff]
    %v50 = vld [vmem:[%s2] sm:$0xff]
    %v51 = vld [vmem:[%s2 + $0x8] sm:$0xff]
    %v52 = vld [vmem:[%s3] sm:$0xf]
    %vm53 = vcmask 31744
    %v55 = vsel %vm53, %v49, 0
    %vm57 = vcmask 1043456
    %v59 = vsel %vm57, %v52, 0
    %61 = vmatprep.subr.mxu0 0.0
    %62 = vmatpush1.msra.mxu0 0.0
    %63 = vmatprep.subr.mxu0 0.0
    %64 = vmatpush1.msra.mxu0 0.0
    %65 = vmatprep.subr.mxu0 0.0
    %66 = vmatpush1.msra.mxu0 0.0
    %67 = vmatprep.subr.mxu0 0.0
    %68 = vmatpush1.msra.mxu0 0.0
    %69 = vmatprep.subr.mxu0 0.0
    %70 = vmatpush1.msra.mxu0 0.0
    %71 = vmatprep.subr.mxu0 0.0
    %72 = vmatpush1.msra.mxu0 0.0
    %73 = vmatprep.subr.mxu0 0.0
    %74 = vmatpush1.msra.mxu0 0.0
    %75 = vmatprep.subr.mxu0 0.0
    %76 = vmatpush1.msra.mxu0 0.0
    %77 = vmatprep.subr.mxu0 0.0
    %78 = vmatpush1.msra.mxu0 0.0
    %79 = vmatprep.subr.mxu0 0.0
    %80 = vmatpush1.msra.mxu0 0.0
    %81 = vmatprep.subr.mxu0 0.0
    %82 = vmatpush1.msra.mxu0 0.0
    %83 = vmatprep.subr.mxu0 0.0
    %84 = vmatpush1.msra.mxu0 0.0
    %85 = vmatprep.subr.mxu0 0.0
    %86 = vmatpush1.msra.mxu0 0.0
    %87 = vmatprep.subr.mxu0 0.0
    %88 = vmatpush1.msra.mxu0 0.0
    %89 = vmatprep.subr.mxu0 0.0
    %90 = vmatpush1.msra.mxu0 0.0
    %91 = vmatprep.subr.mxu0 0.0
    %92 = vmatpush1.msra.mxu0 %v59
    %93 = vmatprep.subr.mxu0 0.0
    %94 = vmatpush2.msra.mxu0 0.0
    %95 = vmatprep.subr.mxu0 0.0
    %96 = vmatpush2.msra.mxu0 0.0
    %97 = vmatprep.subr.mxu0 0.0
    %98 = vmatpush2.msra.mxu0 0.0
    %99 = vmatprep.subr.mxu0 0.0
    %100 = vmatpush2.msra.mxu0 0.0
    %101 = vmatprep.subr.mxu0 0.0
    %102 = vmatpush2.msra.mxu0 0.0
    %103 = vmatprep.subr.mxu0 0.0
    %104 = vmatpush2.msra.mxu0 0.0
    %105 = vmatprep.subr.mxu0 0.0
    %106 = vmatpush2.msra.mxu0 0.0
    %107 = vmatprep.subr.mxu0 0.0
    %108 = vmatpush2.msra.mxu0 0.0
    %109 = vmatprep.subr.mxu0 0.0
    %110 = vmatpush2.msra.mxu0 0.0
    %111 = vmatprep.subr.mxu0 0.0
    %112 = vmatpush2.msra.mxu0 0.0
    %113 = vmatprep.subr.mxu0 0.0
    %114 = vmatpush2.msra.mxu0 0.0
    %115 = vmatprep.subr.mxu0 0.0
    %116 = vmatpush2.msra.mxu0 0.0
    %117 = vmatprep.subr.mxu0 0.0
    %118 = vmatpush2.msra.mxu0 0.0
    %119 = vmatprep.subr.mxu0 0.0
    %120 = vmatpush2.msra.mxu0 0.0
    %121 = vmatprep.subr.mxu0 0.0
    %122 = vmatpush2.msra.mxu0 0.0
    %123 = vmatprep.subr.mxu0 0.0
    %124 = vmatpush2.msra.mxu0 0.0
    %125 = vmatprep.mubr.f32.mxu0 0.0
    %126 = vmatmul.mubr.f32.gmra.mxu0 %v55
    %v127 = vpop.f32.mrf.mxu0
    %v128 = vadd.f32 0.0, %v127
    %v129 = vpop.f32.mrf.mxu0
    %130 = vdwg.mxu0
    %vm131 = vcmask 130048
    %v133 = vsel %vm131, %v48, 0
    %135 = vmatprep.subr.mxu0 0.0
    %136 = vmatpush1.msra.mxu0 0.0
    %137 = vmatprep.subr.mxu0 0.0
    %138 = vmatpush1.msra.mxu0 0.0
    %139 = vmatprep.subr.mxu0 0.0
    %140 = vmatpush1.msra.mxu0 0.0
    %141 = vmatprep.subr.mxu0 0.0
    %142 = vmatpush1.msra.mxu0 0.0
    %143 = vmatprep.subr.mxu0 0.0
    %144 = vmatpush1.msra.mxu0 0.0
    %145 = vmatprep.subr.mxu0 0.0
    %146 = vmatpush1.msra.mxu0 0.0
    %147 = vmatprep.subr.mxu0 0.0
    %148 = vmatpush1.msra.mxu0 0.0
    %149 = vmatprep.subr.mxu0 0.0
    %150 = vmatpush1.msra.mxu0 0.0
    %151 = vmatprep.subr.mxu0 0.0
    %152 = vmatpush1.msra.mxu0 0.0
    %153 = vmatprep.subr.mxu0 0.0
    %154 = vmatpush1.msra.mxu0 0.0
    %155 = vmatprep.subr.mxu0 0.0
    %156 = vmatpush1.msra.mxu0 0.0
    %157 = vmatprep.subr.mxu0 0.0
    %158 = vmatpush1.msra.mxu0 0.0
    %159 = vmatprep.subr.mxu0 0.0
    %160 = vmatpush1.msra.mxu0 0.0
    %161 = vmatprep.subr.mxu0 0.0
    %162 = vmatpush1.msra.mxu0 0.0
    %163 = vmatprep.subr.mxu0 0.0
    %164 = vmatpush1.msra.mxu0 %v51
    %165 = vmatprep.subr.mxu0 0.0
    %166 = vmatpush1.msra.mxu0 %v50
    %167 = vmatprep.subr.mxu0 0.0
    %168 = vmatpush2.msra.mxu0 0.0
    %169 = vmatprep.subr.mxu0 0.0
    %170 = vmatpush2.msra.mxu0 0.0
    %171 = vmatprep.subr.mxu0 0.0
    %172 = vmatpush2.msra.mxu0 0.0
    %173 = vmatprep.subr.mxu0 0.0
    %174 = vmatpush2.msra.mxu0 0.0
    %175 = vmatprep.subr.mxu0 0.0
    %176 = vmatpush2.msra.mxu0 0.0
    %177 = vmatprep.subr.mxu0 0.0
    %178 = vmatpush2.msra.mxu0 0.0
    %179 = vmatprep.subr.mxu0 0.0
    %180 = vmatpush2.msra.mxu0 0.0
    %181 = vmatprep.subr.mxu0 0.0
    %182 = vmatpush2.msra.mxu0 0.0
    %183 = vmatprep.subr.mxu0 0.0
    %184 = vmatpush2.msra.mxu0 0.0
    %185 = vmatprep.subr.mxu0 0.0
    %186 = vmatpush2.msra.mxu0 0.0
    %187 = vmatprep.subr.mxu0 0.0
    %188 = vmatpush2.msra.mxu0 0.0
    %189 = vmatprep.subr.mxu0 0.0
    %190 = vmatpush2.msra.mxu0 0.0
    %191 = vmatprep.subr.mxu0 0.0
    %192 = vmatpush2.msra.mxu0 0.0
    %193 = vmatprep.subr.mxu0 0.0
    %194 = vmatpush2.msra.mxu0 0.0
    %195 = vmatprep.subr.mxu0 0.0
    %196 = vmatpush2.msra.mxu0 0.0
    %197 = vmatprep.subr.mxu0 0.0
    %198 = vmatpush2.msra.mxu0 0.0
    %199 = vmatprep.mubr.f32.mxu0 0.0
    %200 = vmatmul.mubr.f32.gmra.mxu0 %v133
    %v201 = vpop.f32.mrf.mxu0
    %v202 = vadd.f32 %v128, %v201
    %v203 = vpop.f32.mrf.mxu0
    %204 = vdwg.mxu0
    %v205 = vld [vmem:[%s4] sm:$0x1]
    %v207 = vlaneseq
    %v208 = vshrl.u32 %v207, 7
    %v209 = vsub.s32 0, %v208
    %v210 = vrot.slane %v205, %v209
    %v212 = vadd.f32 %v202, %v210
    %v213 = vmax.f32 %v212, 0.0
    %v214 = vld [vmem:[#allocation3] sm:$0xff]
    %v215 = vld [vmem:[#allocation3 + $0x8] sm:$0xff]
    %v216 = vld [vmem:[#allocation3 + $0x10] sm:$0xff]
    %v217 = vld [vmem:[#allocation3 + $0x18] sm:$0xff]
    %v218 = vld [vmem:[#allocation3 + $0x20] sm:$0xff]
    %v219 = vld [vmem:[#allocation3 + $0x28] sm:$0xff]
    %v220 = vld [vmem:[#allocation3 + $0x30] sm:$0xff]
    %v221 = vld [vmem:[#allocation3 + $0x38] sm:$0xff]
    %v222 = vld [vmem:[#allocation3 + $0x40] sm:$0xff]
    %v223 = vld [vmem:[#allocation3 + $0x48] sm:$0xff]
    %v224 = vld [vmem:[#allocation3 + $0x50] sm:$0xff]
    %v225 = vld [vmem:[#allocation3 + $0x58] sm:$0xff]
    %v226 = vld [vmem:[#allocation3 + $0x60] sm:$0xff]
    %v227 = vld [vmem:[#allocation3 + $0x68] sm:$0xff]
    %v228 = vld [vmem:[#allocation3 + $0x70] sm:$0xff]
    %v229 = vld [vmem:[#allocation3 + $0x78] sm:$0xff]
    %v230 = vld [vmem:[%s6] sm:$0x1]
    %v232 = vlaneseq
    %v233 = vshrl.u32 %v232, 7
    %v234 = vsub.s32 0, %v233
    %v235 = vrot.slane %v230, %v234
    %237 = vmatprep.subr.mxu0 0.0
    %238 = vmatpush1.msra.mxu0 %v229
    %239 = vmatprep.subr.mxu0 0.0
    %240 = vmatpush1.msra.mxu0 %v228
    %241 = vmatprep.subr.mxu0 0.0
    %242 = vmatpush1.msra.mxu0 %v227
    %243 = vmatprep.subr.mxu0 0.0
    %244 = vmatpush1.msra.mxu0 %v226
    %245 = vmatprep.subr.mxu0 0.0
    %246 = vmatpush1.msra.mxu0 %v225
    %247 = vmatprep.subr.mxu0 0.0
    %248 = vmatpush1.msra.mxu0 %v224
    %249 = vmatprep.subr.mxu0 0.0
    %250 = vmatpush1.msra.mxu0 %v223
    %251 = vmatprep.subr.mxu0 0.0
    %252 = vmatpush1.msra.mxu0 %v222
    %253 = vmatprep.subr.mxu0 0.0
    %254 = vmatpush1.msra.mxu0 %v221
    %255 = vmatprep.subr.mxu0 0.0
    %256 = vmatpush1.msra.mxu0 %v220
    %257 = vmatprep.subr.mxu0 0.0
    %258 = vmatpush1.msra.mxu0 %v219
    %259 = vmatprep.subr.mxu0 0.0
    %260 = vmatpush1.msra.mxu0 %v218
    %261 = vmatprep.subr.mxu0 0.0
    %262 = vmatpush1.msra.mxu0 %v217
    %263 = vmatprep.subr.mxu0 0.0
    %264 = vmatpush1.msra.mxu0 %v216
    %265 = vmatprep.subr.mxu0 0.0
    %266 = vmatpush1.msra.mxu0 %v215
    %267 = vmatprep.subr.mxu0 0.0
    %268 = vmatpush1.msra.mxu0 %v214
    %269 = vmatprep.subr.mxu0 0.0
    %270 = vmatpush2.msra.mxu0 0.0
    %271 = vmatprep.subr.mxu0 0.0
    %272 = vmatpush2.msra.mxu0 0.0
    %273 = vmatprep.subr.mxu0 0.0
    %274 = vmatpush2.msra.mxu0 0.0
    %275 = vmatprep.subr.mxu0 0.0
    %276 = vmatpush2.msra.mxu0 0.0
    %277 = vmatprep.subr.mxu0 0.0
    %278 = vmatpush2.msra.mxu0 0.0
    %279 = vmatprep.subr.mxu0 0.0
    %280 = vmatpush2.msra.mxu0 0.0
    %281 = vmatprep.subr.mxu0 0.0
    %282 = vmatpush2.msra.mxu0 0.0
    %283 = vmatprep.subr.mxu0 0.0
    %284 = vmatpush2.msra.mxu0 0.0
    %285 = vmatprep.subr.mxu0 0.0
    %286 = vmatpush2.msra.mxu0 0.0
    %287 = vmatprep.subr.mxu0 0.0
    %288 = vmatpush2.msra.mxu0 0.0
    %289 = vmatprep.subr.mxu0 0.0
    %290 = vmatpush2.msra.mxu0 0.0
    %291 = vmatprep.subr.mxu0 0.0
    %292 = vmatpush2.msra.mxu0 0.0
    %293 = vmatprep.subr.mxu0 0.0
    %294 = vmatpush2.msra.mxu0 0.0
    %295 = vmatprep.subr.mxu0 0.0
    %296 = vmatpush2.msra.mxu0 0.0
    %297 = vmatprep.subr.mxu0 0.0
    %298 = vmatpush2.msra.mxu0 0.0
    %299 = vmatprep.subr.mxu0 0.0
    %300 = vmatpush2.msra.mxu0 0.0
    %301 = vmatprep.mubr.f32.mxu0 0.0
    %302 = vmatmul.mubr.f32.gmra.mxu0 %v213
    %v303 = vpop.f32.mrf.mxu0
    %v304 = vadd.f32 %v235, %v303
    %v305 = vpop.f32.mrf.mxu0
    %306 = vdwg.mxu0
    %v307 = vmax.f32 %v304, 0.0
    %v308 = vld [vmem:[%s7] sm:$0x1]
    %s309 = sld [smem:[#allocation2]]
    %v310 = vstv %s309
    %311 = vmatprep.subr.mxu0 0.0
    %312 = vmatpush1.xpose.msra.mxu0 0.0
    %313 = vmatprep.subr.mxu0 0.0
    %314 = vmatpush1.xpose.msra.mxu0 0.0
    %315 = vmatprep.subr.mxu0 0.0
    %316 = vmatpush1.xpose.msra.mxu0 0.0
    %317 = vmatprep.subr.mxu0 0.0
    %318 = vmatpush1.xpose.msra.mxu0 0.0
    %319 = vmatprep.subr.mxu0 0.0
    %320 = vmatpush1.xpose.msra.mxu0 0.0
    %321 = vmatprep.subr.mxu0 0.0
    %322 = vmatpush1.xpose.msra.mxu0 0.0
    %323 = vmatprep.subr.mxu0 0.0
    %324 = vmatpush1.xpose.msra.mxu0 0.0
    %325 = vmatprep.subr.mxu0 0.0
    %326 = vmatpush1.xpose.msra.mxu0 0.0
    %327 = vmatprep.subr.mxu0 0.0
    %328 = vmatpush1.xpose.msra.mxu0 0.0
    %329 = vmatprep.subr.mxu0 0.0
    %330 = vmatpush1.xpose.msra.mxu0 0.0
    %331 = vmatprep.subr.mxu0 0.0
    %332 = vmatpush1.xpose.msra.mxu0 0.0
    %333 = vmatprep.subr.mxu0 0.0
    %334 = vmatpush1.xpose.msra.mxu0 0.0
    %335 = vmatprep.subr.mxu0 0.0
    %336 = vmatpush1.xpose.msra.mxu0 0.0
    %337 = vmatprep.subr.mxu0 0.0
    %338 = vmatpush1.xpose.msra.mxu0 0.0
    %339 = vmatprep.subr.mxu0 0.0
    %340 = vmatpush1.xpose.msra.mxu0 0.0
    %341 = vmatprep.subr.mxu0 0.0
    %342 = vmatpush1.xpose.msra.mxu0 %v307
    %343 = vmatprep.subr.mxu0 0.0
    %344 = vmatpush2.xpose.msra.mxu0 0.0
    %345 = vmatprep.subr.mxu0 0.0
    %346 = vmatpush2.xpose.msra.mxu0 0.0
    %347 = vmatprep.subr.mxu0 0.0
    %348 = vmatpush2.xpose.msra.mxu0 0.0
    %349 = vmatprep.subr.mxu0 0.0
    %350 = vmatpush2.xpose.msra.mxu0 0.0
    %351 = vmatprep.subr.mxu0 0.0
    %352 = vmatpush2.xpose.msra.mxu0 0.0
    %353 = vmatprep.subr.mxu0 0.0
    %354 = vmatpush2.xpose.msra.mxu0 0.0
    %355 = vmatprep.subr.mxu0 0.0
    %356 = vmatpush2.xpose.msra.mxu0 0.0
    %357 = vmatprep.subr.mxu0 0.0
    %358 = vmatpush2.xpose.msra.mxu0 0.0
    %359 = vmatprep.subr.mxu0 0.0
    %360 = vmatpush2.xpose.msra.mxu0 0.0
    %361 = vmatprep.subr.mxu0 0.0
    %362 = vmatpush2.xpose.msra.mxu0 0.0
    %363 = vmatprep.subr.mxu0 0.0
    %364 = vmatpush2.xpose.msra.mxu0 0.0
    %365 = vmatprep.subr.mxu0 0.0
    %366 = vmatpush2.xpose.msra.mxu0 0.0
    %367 = vmatprep.subr.mxu0 0.0
    %368 = vmatpush2.xpose.msra.mxu0 0.0
    %369 = vmatprep.subr.mxu0 0.0
    %370 = vmatpush2.xpose.msra.mxu0 0.0
    %371 = vmatprep.subr.mxu0 0.0
    %372 = vmatpush2.xpose.msra.mxu0 0.0
    %373 = vmatprep.subr.mxu0 0.0
    %374 = vmatpush2.xpose.msra.mxu0 0.0
    %375 = vmatprep.mubr.f32.mxu0 0.0
    %376 = vmatmul.mubr.f32.gmra.mxu0 %v308
    %v377 = vpop.f32.mrf.mxu0
    %v378 = vadd.f32 %v310, %v377
    %v379 = vpop.f32.mrf.mxu0
    %380 = vdwg.mxu0
    %vm381 = vcmask 57344
    %382 = vst.msk [vmem:[#allocation6] sm:$0x1] %vm381, %v378
    // Predicated region
    $region42: #{qnet_forward.1} parent=1 // pred_check
      _
    $region43: #{qnet_forward.1} parent=1 // pred_check_branch
      %384 = sbr.rel (0) target = $region45
    $region44: #{qnet_forward.1} parent=1 // pred_region
      %s386 = ssub.s32 16, 16
      %387 = vsyncadd [#allocation5], %s386
      %s389 = sshll.u32 [#allocation6], 4
      %s390 = int_to_ptr.vmem [resolvable:$true] %s389
      %392 = dma.vmem_to_hbm [thread:$0]  %s390, 16, %s9, [#allocation5]
    $region45: #{qnet_forward.1} parent=1 // pred_fallthru
      _
    // Predicated region
    $region46: #{qnet_forward.1} parent=1 // pred_check
      _
    $region47: #{qnet_forward.1} parent=1 // pred_check_branch
      %394 = sbr.rel (0) target = $region49
    $region48: #{qnet_forward.1} parent=1 // pred_region
      %395 = dma.done [#allocation5], 16
    $region49: #{qnet_forward.1} parent=1 // pred_fallthru
      _
    %396 = vsyncpa [#allocation4], 1
    %397 = vsyncpa [#allocation5], 1

</llo_original>
